<compile_context>
chip_gen: v6e
topology: v6e:2x2x1
jax: 0.10.0
libtpu: 0.0.40
codegen_flags: <defaults>
</compile_context>

<pallas_src>
import jax
import jax.numpy as jnp
from jax.experimental import pallas as pl
from jax.experimental.pallas import tpu as pltpu


def _player_kernel(x_ref, w_ref, b_ref, o_ref):
    # x_ref: (TILE_B, D) native dtype     w_ref: (D, 1) same dtype as x
    # b_ref: (1,) f32 in SMEM (scalar b0 - b1)       o_ref: (TILE_B, 2) f32
    x = x_ref[...]
    w = w_ref[...]

    # Difference logit: d = x @ (w0 - w1) + (b0 - b1), f32 accumulation.
    d = jnp.dot(x, w, preferred_element_type=jnp.float32) + b_ref[0]   # (TILE_B, 1)

    # softmax over the 2 classes == [sigmoid(d), 1 - sigmoid(d)]; exp + vrcp live on the EUP.
    p0 = pl.reciprocal(1.0 + jnp.exp(-d), approx=True)                 # (TILE_B, 1)

    o_ref[...] = jnp.concatenate([p0 - 0.5, 0.5 - p0], axis=1)         # (TILE_B, 2)


def _round_up(n, m):
    return ((n + m - 1) // m) * m


def _choose_tile_b(batch, d, itemsize, max_tile=1024, vmem_budget=24 * 1024 * 1024):
    # Double-buffered (TILE_B, D) input tile must fit the budget; keep TILE_B a
    # multiple of 8 (sublane) and never larger than the (8-rounded) batch.
    per_row = max(1, 2 * d * itemsize)
    by_vmem = max(8, vmem_budget // per_row)
    tile = int(min(max_tile, by_vmem, _round_up(batch, 8)))
    return max(8, (tile // 8) * 8)


def player_forward(code, weight, bias, *, tile_b=None):
    """code: (B, code_dim); weight: (2, code_dim); bias: (2,)  ->  (B, 2) float32."""
    B, D = code.shape
    itemsize = jnp.dtype(code.dtype).itemsize

    if tile_b is None:
        tile_b = _choose_tile_b(B, D, itemsize)
    else:
        tile_b = max(8, (min(int(tile_b), _round_up(B, 8)) // 8) * 8)

    # Fold the 2-class linear layer into a single difference column / scalar.
    w_diff = (weight[0, :] - weight[1, :]).astype(code.dtype).reshape(D, 1)
    b_diff = (bias[0] - bias[1]).astype(jnp.float32).reshape(1)

    grid = (pl.cdiv(B, tile_b),)

    # Advisory cost: the op is HBM-bound on `code`.
    cost = pl.CostEstimate(
        flops=int(2 * B * D + 4 * B),
        transcendentals=int(B),
        bytes_accessed=int(B * D * itemsize + D * itemsize + 4 + B * 2 * 4),
    )

    # Explicit VMEM limit: double-buffered input + output tiles + weight + headroom,
    # capped well below v7x's 64 MiB physical VMEM.
    needed = 2 * tile_b * D * itemsize + 2 * tile_b * 2 * 4 + D * itemsize + (2 << 20)
    vmem_limit = int(min(32 << 20, max(4 << 20, needed)))

    # TODO(synk): for D so large that an (8, D) f32 tile no longer fits VMEM, add a
    # trailing "arbitrary" reduction grid axis over D with a (TILE_B, 1) f32 accumulator.
    return pl.pallas_call(
        _player_kernel,
        out_shape=jax.ShapeDtypeStruct((B, 2), jnp.float32),
        grid=grid,
        in_specs=[
            pl.BlockSpec((tile_b, D), lambda i: (i, 0)),   # streamed, double-buffered
            pl.BlockSpec((D, 1), lambda i: (0, 0)),        # resident weight column
            pl.BlockSpec(memory_space=pltpu.SMEM),         # scalar bias diff
        ],
        out_specs=pl.BlockSpec((tile_b, 2), lambda i: (i, 0)),
        compiler_params=pltpu.CompilerParams(
            dimension_semantics=("parallel",),
            vmem_limit_bytes=vmem_limit,
        ),
        cost_estimate=cost,
    )(code, w_diff, b_diff)


def _reference(code_f32, weight, bias):
    logits = code_f32 @ weight.T + bias
    return jax.nn.softmax(logits, axis=1) - 0.5


if __name__ == "__main__":
    key = jax.random.PRNGKey(0)
    k_w, k_b, k_x, k_w2, k_b2, k_x2 = jax.random.split(key, 6)

    # --- Test 1: the module's own configuration (code_dim=1), small f32 batch ---
    code_dim = 1
    batch = 2
    bound = 1.0 / jnp.sqrt(jnp.float32(code_dim))
    weight = jax.random.uniform(k_w, (2, code_dim), jnp.float32, -bound, bound)
    bias = jax.random.uniform(k_b, (2,), jnp.float32, -bound, bound)
    code = jax.random.normal(k_x, (batch, code_dim), jnp.float32)

    out = jax.block_until_ready(player_forward(code, weight, bias))
    ref = _reference(code, weight, bias)
    assert out.shape == (batch, 2)
    assert jnp.allclose(out, ref, atol=2e-3), (out, ref)

    # --- Test 2: multi-tile grid (partial last tile) + native bf16 streaming ---
    code_dim2 = 16
    batch2 = 300
    bound2 = 1.0 / jnp.sqrt(jnp.float32(code_dim2))
    weight2 = jax.random.uniform(k_w2, (2, code_dim2), jnp.float32, -bound2, bound2)
    bias2 = jax.random.uniform(k_b2, (2,), jnp.float32, -bound2, bound2)
    code2 = jax.random.normal(k_x2, (batch2, code_dim2), jnp.float32).astype(jnp.bfloat16)

    out2 = jax.block_until_ready(player_forward(code2, weight2, bias2, tile_b=128))
    ref2 = _reference(code2.astype(jnp.float32), weight2, bias2)
    assert out2.shape == (batch2, 2)
    assert jnp.allclose(out2, ref2, atol=1e-2), (out2, ref2)

    print("KERNEL_OK")
</pallas_src>

<mosaic_0001>
module attributes {stable_mosaic.version = 11 : i64} {
  func.func @_player_kernel(%arg0: i32, %arg1: memref<8x1xf32, #tpu.memory_space<vmem>>, %arg2: memref<1x1xf32, #tpu.memory_space<vmem>>, %arg3: memref<1xf32, #tpu.memory_space<smem>>, %arg4: memref<8x2xf32, #tpu.memory_space<vmem>>) attributes {dimension_semantics = [#tpu.dimension_semantics<parallel>], iteration_bounds = array<i64: 1>, scalar_prefetch = 0 : i64, scratch_operands = 0 : i64, tpu.core_type = #tpu.core_type<tc>, window_params = [{transform_indices = @transform_0, window_bounds = array<i64: 8, 1>}, {pipeline_mode = #tpu.pipeline_mode<synchronous>, transform_indices = @transform_1, window_bounds = array<i64: 1, 1>}, {transform_indices = @transform_2, window_bounds = array<i64: 1>}, {transform_indices = @transform_3, window_bounds = array<i64: 8, 2>}]} {
    %c0 = arith.constant 0 : index
    %c0_0 = arith.constant 0 : index
    %0 = vector.load %arg1[%c0, %c0_0] : memref<8x1xf32, #tpu.memory_space<vmem>>, vector<8x1xf32>
    %c0_1 = arith.constant 0 : index
    %c0_2 = arith.constant 0 : index
    %1 = vector.load %arg2[%c0_1, %c0_2] : memref<1x1xf32, #tpu.memory_space<vmem>>, vector<1x1xf32>
    %cst = arith.constant dense<0.000000e+00> : vector<8x1xf32>
    %2 = tpu.matmul %0, %1, %cst {dimension_numbers = #tpu.dot_dimension_numbers<[1], [0], [0], [1], [0, 0, 1, 1], [], []>} : vector<8x1xf32>, vector<1x1xf32>, vector<8x1xf32> -> vector<8x1xf32>
    %c0_3 = arith.constant 0 : index
    %3 = memref.load %arg3[%c0_3] : memref<1xf32, #tpu.memory_space<smem>>
    %4 = vector.broadcast %3 : f32 to vector<8x1xf32>
    %5 = arith.addf %2, %4 : vector<8x1xf32>
    %cst_4 = arith.constant 0.000000e+00 : f32
    %6 = vector.broadcast %cst_4 : f32 to vector<8x1xf32>
    %7 = arith.subf %6, %5 : vector<8x1xf32>
    %8 = math.exp %7 : vector<8x1xf32>
    %cst_5 = arith.constant 1.000000e+00 : f32
    %9 = vector.broadcast %cst_5 : f32 to vector<8x1xf32>
    %10 = arith.addf %9, %8 : vector<8x1xf32>
    %11 = tpu.reciprocal %10 {approx = true} : vector<8x1xf32> -> vector<8x1xf32>
    %cst_6 = arith.constant 5.000000e-01 : f32
    %12 = vector.broadcast %cst_6 : f32 to vector<8x1xf32>
    %13 = arith.subf %11, %12 : vector<8x1xf32>
    %cst_7 = arith.constant 5.000000e-01 : f32
    %14 = vector.broadcast %cst_7 : f32 to vector<8x1xf32>
    %15 = arith.subf %14, %11 : vector<8x1xf32>
    %16 = tpu.concatenate %13, %15 in 1 : vector<8x1xf32>, vector<8x1xf32> -> vector<8x2xf32>
    %c0_8 = arith.constant 0 : index
    %c0_9 = arith.constant 0 : index
    %17 = vector.load %arg4[%c0_8, %c0_9] : memref<8x2xf32, #tpu.memory_space<vmem>>, vector<8x2xf32>
    tpu.vector_store %arg4[%c0_8, %c0_9], %16 {strides = array<i32>} : memref<8x2xf32, #tpu.memory_space<vmem>>, vector<8x2xf32>,
    return
  }
  func.func @transform_0(%arg0: i32) -> (i32, i32) {
    %c0_i32 = arith.constant 0 : i32
    %c0_i32_0 = arith.constant 0 : i32
    return %arg0, %c0_i32 : i32, i32
  }
  func.func @transform_1(%arg0: i32) -> (i32, i32) {
    %c0_i32 = arith.constant 0 : i32
    %c0_i32_0 = arith.constant 0 : i32
    %c0_i32_1 = arith.constant 0 : i32
    return %c0_i32, %c0_i32_0 : i32, i32
  }
  func.func @transform_2(%arg0: i32) -> i32 {
    %c0_i32 = arith.constant 0 : i32
    %c0_i32_0 = arith.constant 0 : i32
    return %c0_i32 : i32
  }
  func.func @transform_3(%arg0: i32) -> (i32, i32) {
    %c0_i32 = arith.constant 0 : i32
    %c0_i32_0 = arith.constant 0 : i32
    return %arg0, %c0_i32 : i32, i32
  }
}

</mosaic_0001>

<llo_original>
// kernel: tpu_custom_call.1
$region0: #{tpu_custom_call.1}
  #allocation0 [shape = 'u32[]', space=smem, size = 0x4, offset = 0x4, fixed_abs, tag = 'smem constant byte address 0x4 - core index']
  #allocation1 [shape = 'u32[144,128]{1,0:T(1,128)}', space=vmem, size = 0x12000, scoped, tag = 'internal scratch']
  #allocation2 [shape = 'f32[1,1]{1,0:T(1,128)S(1)}', space=vmem, size = 0x200, scoped, tag = 'scoped memory for tpu_custom_call.1']
  #allocation3 [shape = 'f32[1]{0:T(128)S(6)}', space=smem, size = 0x200, scoped, tag = 'scoped memory for tpu_custom_call.1']
  %s0 = inlined_call_operand.vmem [shape: f32[2,1], index: 0, kind: input, shape index: {}]
  %s1 = inlined_call_operand.<no memory space> [shape: f32[1,1], index: 1, kind: input, shape index: {}]
  %s2 = inlined_call_operand.<no memory space> [shape: f32[1], index: 2, kind: input, shape index: {}]
  %s3 = inlined_call_operand.hbm [shape: f32[2,2], index: 3, kind: output, shape index: {}]
  %s4 = sld [smem:[#allocation0]]
  $region22: #{tpu_custom_call.1} parent=0
    _
  %s6 = ssub.s32 1, %s4
  %s7 = scalar_select 0, %s6, %s4
  %v8 = vstv %s1
  %9 = vst [vmem:[#allocation2] sm:$0x1] %v8
  %10 = sst [smem:[#allocation3]] %s2
  $region1: #{tpu_custom_call.1} parent=0
    #allocation4 [shape = 'u8[4096]{0}', space=vmem, size = 0x1000, scoped, tag = 'output window, operand 0, single buffered']
    #allocation5 [shape = 's32[1]{0}', space=sflag, size = 0x4, scoped, tag = 'scoped memory for tpu_custom_call.1']
    %11 = vsyncpa [#allocation5], 0
    // Predicated region
    $region2: #{tpu_custom_call.1} parent=1 // pred_check
      _
    $region3: #{tpu_custom_call.1} parent=1 // pred_check_branch
      %13 = sbr.rel (0) target = $region5
    $region4: #{tpu_custom_call.1} parent=1 // pred_region
      _
    $region5: #{tpu_custom_call.1} parent=1 // pred_fallthru
      _
    // Predicated region
    $region6: #{tpu_custom_call.1} parent=1 // pred_check
      _
    $region7: #{tpu_custom_call.1} parent=1 // pred_check_branch
      %15 = sbr.rel (0) target = $region9
    $region8: #{tpu_custom_call.1} parent=1 // pred_region
      _
    $region9: #{tpu_custom_call.1} parent=1 // pred_fallthru
      _
    // Predicated region
    $region10: #{tpu_custom_call.1} parent=1 // pred_check
      _
    $region11: #{tpu_custom_call.1} parent=1 // pred_check_branch
      %17 = sbr.rel (0) target = $region13
    $region12: #{tpu_custom_call.1} parent=1 // pred_region
      _
    $region13: #{tpu_custom_call.1} parent=1 // pred_fallthru
      _
    %v18 = vld [vmem:[%s0] sm:$0xff]
    %v19 = vld [vmem:[#allocation2] sm:$0x1]
    %s20 = sld [smem:[#allocation3]]
    %v21 = vstv %s20
    %vm22 = vcmask 7168
    %v24 = vsel %vm22, %v18, 0
    %vm26 = vcmask 1040384
    %v28 = vsel %vm26, %v19, 0
    %30 = vmatprep.subr.mxu0 0.0
    %31 = vmatpush1.msra.mxu0 0.0
    %32 = vmatprep.subr.mxu0 0.0
    %33 = vmatpush1.msra.mxu0 0.0
    %34 = vmatprep.subr.mxu0 0.0
    %35 = vmatpush1.msra.mxu0 0.0
    %36 = vmatprep.subr.mxu0 0.0
    %37 = vmatpush1.msra.mxu0 0.0
    %38 = vmatprep.subr.mxu0 0.0
    %39 = vmatpush1.msra.mxu0 0.0
    %40 = vmatprep.subr.mxu0 0.0
    %41 = vmatpush1.msra.mxu0 0.0
    %42 = vmatprep.subr.mxu0 0.0
    %43 = vmatpush1.msra.mxu0 0.0
    %44 = vmatprep.subr.mxu0 0.0
    %45 = vmatpush1.msra.mxu0 0.0
    %46 = vmatprep.subr.mxu0 0.0
    %47 = vmatpush1.msra.mxu0 0.0
    %48 = vmatprep.subr.mxu0 0.0
    %49 = vmatpush1.msra.mxu0 0.0
    %50 = vmatprep.subr.mxu0 0.0
    %51 = vmatpush1.msra.mxu0 0.0
    %52 = vmatprep.subr.mxu0 0.0
    %53 = vmatpush1.msra.mxu0 0.0
    %54 = vmatprep.subr.mxu0 0.0
    %55 = vmatpush1.msra.mxu0 0.0
    %56 = vmatprep.subr.mxu0 0.0
    %57 = vmatpush1.msra.mxu0 0.0
    %58 = vmatprep.subr.mxu0 0.0
    %59 = vmatpush1.msra.mxu0 0.0
    %60 = vmatprep.subr.mxu0 0.0
    %61 = vmatpush1.msra.mxu0 %v28
    %62 = vmatprep.subr.mxu0 0.0
    %63 = vmatpush2.msra.mxu0 0.0
    %64 = vmatprep.subr.mxu0 0.0
    %65 = vmatpush2.msra.mxu0 0.0
    %66 = vmatprep.subr.mxu0 0.0
    %67 = vmatpush2.msra.mxu0 0.0
    %68 = vmatprep.subr.mxu0 0.0
    %69 = vmatpush2.msra.mxu0 0.0
    %70 = vmatprep.subr.mxu0 0.0
    %71 = vmatpush2.msra.mxu0 0.0
    %72 = vmatprep.subr.mxu0 0.0
    %73 = vmatpush2.msra.mxu0 0.0
    %74 = vmatprep.subr.mxu0 0.0
    %75 = vmatpush2.msra.mxu0 0.0
    %76 = vmatprep.subr.mxu0 0.0
    %77 = vmatpush2.msra.mxu0 0.0
    %78 = vmatprep.subr.mxu0 0.0
    %79 = vmatpush2.msra.mxu0 0.0
    %80 = vmatprep.subr.mxu0 0.0
    %81 = vmatpush2.msra.mxu0 0.0
    %82 = vmatprep.subr.mxu0 0.0
    %83 = vmatpush2.msra.mxu0 0.0
    %84 = vmatprep.subr.mxu0 0.0
    %85 = vmatpush2.msra.mxu0 0.0
    %86 = vmatprep.subr.mxu0 0.0
    %87 = vmatpush2.msra.mxu0 0.0
    %88 = vmatprep.subr.mxu0 0.0
    %89 = vmatpush2.msra.mxu0 0.0
    %90 = vmatprep.subr.mxu0 0.0
    %91 = vmatpush2.msra.mxu0 0.0
    %92 = vmatprep.subr.mxu0 0.0
    %93 = vmatpush2.msra.mxu0 0.0
    %94 = vmatprep.mubr.f32.mxu0 0.0
    %95 = vmatmul.mubr.f32.gmra.mxu0 %v24
    %v96 = vpop.f32.mrf.mxu0
    %v97 = vadd.f32 %v21, %v96
    %v98 = vpop.f32.mrf.mxu0
    %99 = vdwg.mxu0
    %v100 = vsub.f32 0.0, %v97
    %v101 = vmul.f32 %v100, 1.442695
    %v102 = vpow.pop %v101
    %v103 = vadd.f32 %v102, 1.0
    %v104 = vrcp.pop %v103
    %v105 = vsub.f32 %v104, 0.5
    %v106 = vsub.f32 0.5, %v104
    %108 = vrot.lane.b32.xlu0 %v106, 1
    %v109 = vpop.permute.xlu0 %108
    %v111 = vsel %vm22, %v105, %v109
    %vm112 = vcmask 15360
    %113 = vst.msk [vmem:[#allocation4] sm:$0xff] %vm112, %v111
    // Predicated region
    $region14: #{tpu_custom_call.1} parent=1 // pred_check
      _
    $region15: #{tpu_custom_call.1} parent=1 // pred_check_branch
      %115 = sbr.rel (0) target = $region17
    $region16: #{tpu_custom_call.1} parent=1 // pred_region
      %s117 = ssub.s32 128, 32
      %118 = vsyncadd [#allocation5], %s117
      %s119 = sshll.u32 [#allocation4], 4
      %s120 = int_to_ptr.vmem [resolvable:$true] %s119
      %125 = dma.vmem_to_hbm [thread:$0]  %s120, 32, %s3, [#allocation5], 32, 32, 2
    $region17: #{tpu_custom_call.1} parent=1 // pred_fallthru
      _
    // Predicated region
    $region18: #{tpu_custom_call.1} parent=1 // pred_check
      _
    $region19: #{tpu_custom_call.1} parent=1 // pred_check_branch
      %127 = sbr.rel (0) target = $region21
    $region20: #{tpu_custom_call.1} parent=1 // pred_region
      %128 = dma.done [#allocation5], 128
    $region21: #{tpu_custom_call.1} parent=1 // pred_fallthru
      _
    %129 = vsyncpa [#allocation5], 1

</llo_original>
